<compile_context>
chip_gen: v7x
topology: tpu7x:2x2x1
jax: 0.10.0
libtpu: 0.0.40
codegen_flags: <defaults>
</compile_context>

<pallas_src>
import functools

import jax
import jax.numpy as jnp
from jax.experimental import pallas as pl
from jax.experimental.pallas import tpu as pltpu

_SUBLANE = 8


def _round_up(x, m):
    return ((x + m - 1) // m) * m


def dqn_kernel(x_ref, w1_ref, b1_ref, w2_ref, b2_ref, out_ref):
    # x: (TB, S) f32   w1: (S, H) f32   b1: (1, H) f32
    # w2: (H, A) f32   b2: (1, A) f32   out: (TB, A) f32
    h = jnp.dot(x_ref[...], w1_ref[...], preferred_element_type=jnp.float32)
    h = jnp.maximum(h + b1_ref[...], 0.0)                      # bias + ReLU (VPU)
    q = jnp.dot(h, w2_ref[...], preferred_element_type=jnp.float32)
    out_ref[...] = (q + b2_ref[...]).astype(out_ref.dtype)


@functools.partial(jax.jit, static_argnames=("block_b",))
def dqn_forward(state, w1, b1, w2, b2, block_b=512):
    """Fused forward pass of the DQN MLP.

    state: (B, no_states) f32 (or (no_states,) for a single observation)
    w1: (no_states, 128), b1: (128,), w2: (128, no_actions), b2: (no_actions,)
    returns: (B, no_actions) f32 (or (no_actions,) if state was 1-D)
    """
    squeeze = state.ndim == 1
    if squeeze:
        state = state[None, :]

    B, S = state.shape
    H = w1.shape[1]
    A = w2.shape[1]

    # Batch tiling: pick the number of grid steps first, then the smallest
    # sublane-aligned tile that covers the batch (minimizes padded rows).
    steps = pl.cdiv(B, block_b)
    TB = _round_up(pl.cdiv(B, steps), _SUBLANE)
    B_pad = TB * steps

    x = state.astype(jnp.float32)
    if B_pad != B:
        x = jnp.pad(x, ((0, B_pad - B), (0, 0)))

    w1_f = w1.astype(jnp.float32)
    w2_f = w2.astype(jnp.float32)
    b1_2d = b1.reshape(1, H).astype(jnp.float32)
    b2_2d = b2.reshape(1, A).astype(jnp.float32)

    flops = 2 * B_pad * (S * H + H * A)
    bytes_accessed = (B_pad * S * 4 + B_pad * A * 4          # x + out
                      + S * H * 4 + H * A * 4                # weights
                      + H * 4 + A * 4)                       # biases

    q = pl.pallas_call(
        dqn_kernel,
        out_shape=jax.ShapeDtypeStruct((B_pad, A), jnp.float32),
        grid=(steps,),
        in_specs=[
            pl.BlockSpec((TB, S), lambda i: (i, 0)),          # x: tiled over batch
            pl.BlockSpec((S, H), lambda i: (0, 0)),           # w1: VMEM-resident
            pl.BlockSpec((1, H), lambda i: (0, 0)),           # b1
            pl.BlockSpec((H, A), lambda i: (0, 0)),           # w2
            pl.BlockSpec((1, A), lambda i: (0, 0)),           # b2
        ],
        out_specs=pl.BlockSpec((TB, A), lambda i: (i, 0)),
        compiler_params=pltpu.CompilerParams(
            dimension_semantics=("parallel",)),
        cost_estimate=pl.CostEstimate(
            flops=flops, transcendentals=0, bytes_accessed=bytes_accessed),
    )(x, w1_f, b1_2d, w2_f, b2_2d)

    q = q[:B] if B_pad != B else q
    return q[0] if squeeze else q


def init_params(key, no_states, no_actions, hidden=128):
    """Deterministic parameter init (uniform, PyTorch-Linear-style bounds)."""
    k1, k2, k3, k4 = jax.random.split(key, 4)
    bound1 = 1.0 / jnp.sqrt(no_states)
    bound2 = 1.0 / jnp.sqrt(hidden)
    w1 = jax.random.uniform(k1, (no_states, hidden), jnp.float32, -bound1, bound1)
    b1 = jax.random.uniform(k2, (hidden,), jnp.float32, -bound1, bound1)
    w2 = jax.random.uniform(k3, (hidden, no_actions), jnp.float32, -bound2, bound2)
    b2 = jax.random.uniform(k4, (no_actions,), jnp.float32, -bound2, bound2)
    return w1, b1, w2, b2


# TODO(synk): get_td_error / train_model are host-side training logic
# (optimizer, target-net bookkeeping) and are not part of the forward kernel.

if __name__ == "__main__":
    key = jax.random.PRNGKey(0)
    kx, kp = jax.random.split(key)

    no_states = 4    # e.g. CartPole observation dim
    no_actions = 2   # e.g. CartPole action dim
    batch = 8

    state = jax.random.normal(kx, (batch, no_states), dtype=jnp.float32)
    w1, b1, w2, b2 = init_params(kp, no_states, no_actions)

    q = dqn_forward(state, w1, b1, w2, b2)
    jax.block_until_ready(q)
    assert q.shape == (batch, no_actions)

    # Pure-f32 JAX reference (matches nn.Linear semantics).
    h_ref = jnp.maximum(state @ w1 + b1, 0.0)
    ref = h_ref @ w2 + b2
    assert jnp.allclose(q, ref, atol=1e-4, rtol=1e-4)

    # Single-observation path (as used by get_action).
    q1 = dqn_forward(state[0], w1, b1, w2, b2)
    jax.block_until_ready(q1)
    assert q1.shape == (no_actions,)
    assert jnp.allclose(q1, ref[0], atol=1e-4, rtol=1e-4)

    print("KERNEL_OK")
</pallas_src>

<mosaic_0001>
module attributes {stable_mosaic.version = 11 : i64} {
  func.func @dqn_kernel(%arg0: i32, %arg1: memref<8x4xf32, #tpu.memory_space<vmem>>, %arg2: memref<4x128xf32, #tpu.memory_space<vmem>>, %arg3: memref<1x128xf32, #tpu.memory_space<vmem>>, %arg4: memref<128x2xf32, #tpu.memory_space<vmem>>, %arg5: memref<1x2xf32, #tpu.memory_space<vmem>>, %arg6: memref<8x2xf32, #tpu.memory_space<vmem>>) attributes {dimension_semantics = [#tpu.dimension_semantics<parallel>], iteration_bounds = array<i64: 1>, scalar_prefetch = 0 : i64, scratch_operands = 0 : i64, tpu.core_type = #tpu.core_type<tc>, window_params = [{transform_indices = @transform_0, window_bounds = array<i64: 8, 4>}, {pipeline_mode = #tpu.pipeline_mode<synchronous>, transform_indices = @transform_1, window_bounds = array<i64: 4, 128>}, {pipeline_mode = #tpu.pipeline_mode<synchronous>, transform_indices = @transform_2, window_bounds = array<i64: 1, 128>}, {pipeline_mode = #tpu.pipeline_mode<synchronous>, transform_indices = @transform_3, window_bounds = array<i64: 128, 2>}, {pipeline_mode = #tpu.pipeline_mode<synchronous>, transform_indices = @transform_4, window_bounds = array<i64: 1, 2>}, {transform_indices = @transform_5, window_bounds = array<i64: 8, 2>}]} {
    %c0 = arith.constant 0 : index
    %c0_0 = arith.constant 0 : index
    %0 = vector.load %arg1[%c0, %c0_0] : memref<8x4xf32, #tpu.memory_space<vmem>>, vector<8x4xf32>
    %c0_1 = arith.constant 0 : index
    %c0_2 = arith.constant 0 : index
    %1 = vector.load %arg2[%c0_1, %c0_2] : memref<4x128xf32, #tpu.memory_space<vmem>>, vector<4x128xf32>
    %cst = arith.constant dense<0.000000e+00> : vector<8x128xf32>
    %2 = tpu.matmul %0, %1, %cst {dimension_numbers = #tpu.dot_dimension_numbers<[1], [0], [0], [1], [0, 0, 1, 1], [], []>} : vector<8x4xf32>, vector<4x128xf32>, vector<8x128xf32> -> vector<8x128xf32>
    %c0_3 = arith.constant 0 : index
    %c0_4 = arith.constant 0 : index
    %3 = vector.load %arg3[%c0_3, %c0_4] : memref<1x128xf32, #tpu.memory_space<vmem>>, vector<1x128xf32>
    %4 = vector.broadcast %3 : vector<1x128xf32> to vector<8x128xf32>
    %5 = arith.addf %2, %4 : vector<8x128xf32>
    %cst_5 = arith.constant 0.000000e+00 : f32
    %6 = vector.broadcast %cst_5 : f32 to vector<8x128xf32>
    %7 = arith.maximumf %5, %6 : vector<8x128xf32>
    %c0_6 = arith.constant 0 : index
    %c0_7 = arith.constant 0 : index
    %8 = vector.load %arg4[%c0_6, %c0_7] : memref<128x2xf32, #tpu.memory_space<vmem>>, vector<128x2xf32>
    %cst_8 = arith.constant dense<0.000000e+00> : vector<8x2xf32>
    %9 = tpu.matmul %7, %8, %cst_8 {dimension_numbers = #tpu.dot_dimension_numbers<[1], [0], [0], [1], [0, 0, 1, 1], [], []>} : vector<8x128xf32>, vector<128x2xf32>, vector<8x2xf32> -> vector<8x2xf32>
    %c0_9 = arith.constant 0 : index
    %c0_10 = arith.constant 0 : index
    %10 = vector.load %arg5[%c0_9, %c0_10] : memref<1x2xf32, #tpu.memory_space<vmem>>, vector<1x2xf32>
    %11 = vector.broadcast %10 : vector<1x2xf32> to vector<8x2xf32>
    %12 = arith.addf %9, %11 : vector<8x2xf32>
    %c0_11 = arith.constant 0 : index
    %c0_12 = arith.constant 0 : index
    %13 = vector.load %arg6[%c0_11, %c0_12] : memref<8x2xf32, #tpu.memory_space<vmem>>, vector<8x2xf32>
    tpu.vector_store %arg6[%c0_11, %c0_12], %12 {strides = array<i32>} : memref<8x2xf32, #tpu.memory_space<vmem>>, vector<8x2xf32>,
    return
  }
  func.func @transform_0(%arg0: i32) -> (i32, i32) {
    %c0_i32 = arith.constant 0 : i32
    %c0_i32_0 = arith.constant 0 : i32
    return %arg0, %c0_i32 : i32, i32
  }
  func.func @transform_1(%arg0: i32) -> (i32, i32) {
    %c0_i32 = arith.constant 0 : i32
    %c0_i32_0 = arith.constant 0 : i32
    %c0_i32_1 = arith.constant 0 : i32
    return %c0_i32, %c0_i32_0 : i32, i32
  }
  func.func @transform_2(%arg0: i32) -> (i32, i32) {
    %c0_i32 = arith.constant 0 : i32
    %c0_i32_0 = arith.constant 0 : i32
    %c0_i32_1 = arith.constant 0 : i32
    return %c0_i32, %c0_i32_0 : i32, i32
  }
  func.func @transform_3(%arg0: i32) -> (i32, i32) {
    %c0_i32 = arith.constant 0 : i32
    %c0_i32_0 = arith.constant 0 : i32
    %c0_i32_1 = arith.constant 0 : i32
    return %c0_i32, %c0_i32_0 : i32, i32
  }
  func.func @transform_4(%arg0: i32) -> (i32, i32) {
    %c0_i32 = arith.constant 0 : i32
    %c0_i32_0 = arith.constant 0 : i32
    %c0_i32_1 = arith.constant 0 : i32
    return %c0_i32, %c0_i32_0 : i32, i32
  }
  func.func @transform_5(%arg0: i32) -> (i32, i32) {
    %c0_i32 = arith.constant 0 : i32
    %c0_i32_0 = arith.constant 0 : i32
    return %arg0, %c0_i32 : i32, i32
  }
}

</mosaic_0001>

<llo_original>
// kernel: dqn_forward.1
$region0: #{dqn_forward.1}
  #allocation0 [shape = 'u32[]', space=smem, size = 0x4, offset = 0x4, fixed_abs, tag = 'smem constant byte address 0x4 - core index']
  #allocation1 [shape = 'u32[144,128]{1,0:T(1,128)}', space=vmem, size = 0x12000, scoped, tag = 'internal scratch']
  %s0 = inlined_call_operand.vmem [shape: f32[8,4], index: 0, kind: input, shape index: {}]
  %s1 = inlined_call_operand.vmem [shape: f32[4,128], index: 1, kind: input, shape index: {}]
  %s2 = inlined_call_operand.vmem [shape: f32[1,128], index: 2, kind: input, shape index: {}]
  %s3 = inlined_call_operand.vmem [shape: f32[128,2], index: 3, kind: input, shape index: {}]
  %s4 = inlined_call_operand.vmem [shape: f32[1,2], index: 4, kind: input, shape index: {}]
  %s5 = inlined_call_operand.vmem [shape: f32[8,2], index: 5, kind: output, shape index: {}]
  %s6 = sld [smem:[#allocation0]]
  $region30: #{dqn_forward.1} parent=0
    _
  %s8 = ssub.s32 1, %s6
  %s9 = scalar_select 0, %s8, %s6
  // Predicated region
  $region2: #{dqn_forward.1} parent=0 // pred_check
    _
  $region3: #{dqn_forward.1} parent=0 // pred_check_branch
    %11 = sbr.rel (0) target = $region5
  $region4: #{dqn_forward.1} parent=0 // pred_region
    _
  $region5: #{dqn_forward.1} parent=0 // pred_fallthru
    _
  // Predicated region
  $region6: #{dqn_forward.1} parent=0 // pred_check
    _
  $region7: #{dqn_forward.1} parent=0 // pred_check_branch
    %13 = sbr.rel (0) target = $region9
  $region8: #{dqn_forward.1} parent=0 // pred_region
    _
  $region9: #{dqn_forward.1} parent=0 // pred_fallthru
    _
  // Predicated region
  $region10: #{dqn_forward.1} parent=0 // pred_check
    _
  $region11: #{dqn_forward.1} parent=0 // pred_check_branch
    %15 = sbr.rel (0) target = $region13
  $region12: #{dqn_forward.1} parent=0 // pred_region
    _
  $region13: #{dqn_forward.1} parent=0 // pred_fallthru
    _
  // Predicated region
  $region14: #{dqn_forward.1} parent=0 // pred_check
    _
  $region15: #{dqn_forward.1} parent=0 // pred_check_branch
    %17 = sbr.rel (0) target = $region17
  $region16: #{dqn_forward.1} parent=0 // pred_region
    _
  $region17: #{dqn_forward.1} parent=0 // pred_fallthru
    _
  // Predicated region
  $region18: #{dqn_forward.1} parent=0 // pred_check
    _
  $region19: #{dqn_forward.1} parent=0 // pred_check_branch
    %19 = sbr.rel (0) target = $region21
  $region20: #{dqn_forward.1} parent=0 // pred_region
    _
  $region21: #{dqn_forward.1} parent=0 // pred_fallthru
    _
  %v20 = vld [vmem:[%s0] sm:$0xff]
  %v21 = vld [vmem:[%s1] sm:$0xf]
  %v22 = vld [vmem:[%s2] sm:$0x1]
  %v24 = vlaneseq
  %v25 = vshrl.u32 %v24, 7
  %v26 = vsub.s32 0, %v25
  %v27 = vrot.slane %v22, %v26
  %vm29 = vcmask 31744
  %v31 = vsel %vm29, %v20, 0
  %vm33 = vcmask 1043456
  %v35 = vsel %vm33, %v21, 0
  %37 = vmatprep.subr.mxu0 0.0
  %38 = vmatpush1.msra.mxu0 %v35
  %39 = vmatprep.subr.mxu0 0.0
  %40 = vmatpush1.msra.mxu0 0.0
  %41 = vmatprep.subr.mxu0 0.0
  %42 = vmatpush1.msra.mxu0 0.0
  %43 = vmatprep.subr.mxu0 0.0
  %44 = vmatpush1.msra.mxu0 0.0
  %45 = vmatprep.subr.mxu0 0.0
  %46 = vmatpush1.msra.mxu0 0.0
  %47 = vmatprep.subr.mxu0 0.0
  %48 = vmatpush1.msra.mxu0 0.0
  %49 = vmatprep.subr.mxu0 0.0
  %50 = vmatpush1.msra.mxu0 0.0
  %51 = vmatprep.subr.mxu0 0.0
  %52 = vmatpush1.msra.mxu0 0.0
  %53 = vmatprep.subr.mxu0 0.0
  %54 = vmatpush1.msra.mxu0 0.0
  %55 = vmatprep.subr.mxu0 0.0
  %56 = vmatpush1.msra.mxu0 0.0
  %57 = vmatprep.subr.mxu0 0.0
  %58 = vmatpush1.msra.mxu0 0.0
  %59 = vmatprep.subr.mxu0 0.0
  %60 = vmatpush1.msra.mxu0 0.0
  %61 = vmatprep.subr.mxu0 0.0
  %62 = vmatpush1.msra.mxu0 0.0
  %63 = vmatprep.subr.mxu0 0.0
  %64 = vmatpush1.msra.mxu0 0.0
  %65 = vmatprep.subr.mxu0 0.0
  %66 = vmatpush1.msra.mxu0 0.0
  %67 = vmatprep.subr.mxu0 0.0
  %68 = vmatpush1.msra.mxu0 0.0
  %69 = vmatprep.subr.mxu0 0.0
  %70 = vmatpush1.msra.mxu0 0.0
  %71 = vmatprep.subr.mxu0 0.0
  %72 = vmatpush1.msra.mxu0 0.0
  %73 = vmatprep.subr.mxu0 0.0
  %74 = vmatpush1.msra.mxu0 0.0
  %75 = vmatprep.subr.mxu0 0.0
  %76 = vmatpush1.msra.mxu0 0.0
  %77 = vmatprep.subr.mxu0 0.0
  %78 = vmatpush1.msra.mxu0 0.0
  %79 = vmatprep.subr.mxu0 0.0
  %80 = vmatpush1.msra.mxu0 0.0
  %81 = vmatprep.subr.mxu0 0.0
  %82 = vmatpush1.msra.mxu0 0.0
  %83 = vmatprep.subr.mxu0 0.0
  %84 = vmatpush1.msra.mxu0 0.0
  %85 = vmatprep.subr.mxu0 0.0
  %86 = vmatpush1.msra.mxu0 0.0
  %87 = vmatprep.subr.mxu0 0.0
  %88 = vmatpush1.msra.mxu0 0.0
  %89 = vmatprep.subr.mxu0 0.0
  %90 = vmatpush1.msra.mxu0 0.0
  %91 = vmatprep.subr.mxu0 0.0
  %92 = vmatpush1.msra.mxu0 0.0
  %93 = vmatprep.subr.mxu0 0.0
  %94 = vmatpush1.msra.mxu0 0.0
  %95 = vmatprep.subr.mxu0 0.0
  %96 = vmatpush1.msra.mxu0 0.0
  %97 = vmatprep.subr.mxu0 0.0
  %98 = vmatpush1.msra.mxu0 0.0
  %99 = vmatprep.subr.mxu0 0.0
  %100 = vmatpush1.msra.mxu0 0.0
  %101 = vmatprep.mubr.f32.mxu0 0.0
  %102 = vmatmul.mubr.f32.gmra.mrb[0].mxu0 %v31
  %v103 = vpop.f32.mrb[0].mxu0
  %v104 = vadd.f32 %v27, %v103
  %v105 = vpop.f32.mrb[0].mxu0
  %106 = vdwg.mxu0
  %v107 = vmax.f32 %v104, 0.0
  %v108 = vld [vmem:[%s3] sm:$0xff]
  %v109 = vld [vmem:[%s3 + $0x8] sm:$0xff]
  %v110 = vld [vmem:[%s3 + $0x10] sm:$0xff]
  %v111 = vld [vmem:[%s3 + $0x18] sm:$0xff]
  %v112 = vld [vmem:[%s3 + $0x20] sm:$0xff]
  %v113 = vld [vmem:[%s3 + $0x28] sm:$0xff]
  %v114 = vld [vmem:[%s3 + $0x30] sm:$0xff]
  %v115 = vld [vmem:[%s3 + $0x38] sm:$0xff]
  %v116 = vld [vmem:[%s3 + $0x40] sm:$0xff]
  %v117 = vld [vmem:[%s3 + $0x48] sm:$0xff]
  %v118 = vld [vmem:[%s3 + $0x50] sm:$0xff]
  %v119 = vld [vmem:[%s3 + $0x58] sm:$0xff]
  %v120 = vld [vmem:[%s3 + $0x60] sm:$0xff]
  %v121 = vld [vmem:[%s3 + $0x68] sm:$0xff]
  %v122 = vld [vmem:[%s3 + $0x70] sm:$0xff]
  %v123 = vld [vmem:[%s3 + $0x78] sm:$0xff]
  %v124 = vld [vmem:[%s4] sm:$0x1]
  %v126 = vlaneseq
  %v127 = vshrl.u32 %v126, 7
  %v128 = vsub.s32 0, %v127
  %v129 = vrot.slane %v124, %v128
  %131 = vmatprep.subr.mxu0 0.0
  %132 = vmatpush1.msra.mxu0 %v108
  %133 = vmatprep.subr.mxu0 0.0
  %134 = vmatpush1.msra.mxu0 %v109
  %135 = vmatprep.subr.mxu0 0.0
  %136 = vmatpush1.msra.mxu0 %v110
  %137 = vmatprep.subr.mxu0 0.0
  %138 = vmatpush1.msra.mxu0 %v111
  %139 = vmatprep.subr.mxu0 0.0
  %140 = vmatpush1.msra.mxu0 %v112
  %141 = vmatprep.subr.mxu0 0.0
  %142 = vmatpush1.msra.mxu0 %v113
  %143 = vmatprep.subr.mxu0 0.0
  %144 = vmatpush1.msra.mxu0 %v114
  %145 = vmatprep.subr.mxu0 0.0
  %146 = vmatpush1.msra.mxu0 %v115
  %147 = vmatprep.subr.mxu0 0.0
  %148 = vmatpush1.msra.mxu0 %v116
  %149 = vmatprep.subr.mxu0 0.0
  %150 = vmatpush1.msra.mxu0 %v117
  %151 = vmatprep.subr.mxu0 0.0
  %152 = vmatpush1.msra.mxu0 %v118
  %153 = vmatprep.subr.mxu0 0.0
  %154 = vmatpush1.msra.mxu0 %v119
  %155 = vmatprep.subr.mxu0 0.0
  %156 = vmatpush1.msra.mxu0 %v120
  %157 = vmatprep.subr.mxu0 0.0
  %158 = vmatpush1.msra.mxu0 %v121
  %159 = vmatprep.subr.mxu0 0.0
  %160 = vmatpush1.msra.mxu0 %v122
  %161 = vmatprep.subr.mxu0 0.0
  %162 = vmatpush1.msra.mxu0 %v123
  %163 = vmatprep.subr.mxu0 0.0
  %164 = vmatpush1.msra.mxu0 0.0
  %165 = vmatprep.subr.mxu0 0.0
  %166 = vmatpush1.msra.mxu0 0.0
  %167 = vmatprep.subr.mxu0 0.0
  %168 = vmatpush1.msra.mxu0 0.0
  %169 = vmatprep.subr.mxu0 0.0
  %170 = vmatpush1.msra.mxu0 0.0
  %171 = vmatprep.subr.mxu0 0.0
  %172 = vmatpush1.msra.mxu0 0.0
  %173 = vmatprep.subr.mxu0 0.0
  %174 = vmatpush1.msra.mxu0 0.0
  %175 = vmatprep.subr.mxu0 0.0
  %176 = vmatpush1.msra.mxu0 0.0
  %177 = vmatprep.subr.mxu0 0.0
  %178 = vmatpush1.msra.mxu0 0.0
  %179 = vmatprep.subr.mxu0 0.0
  %180 = vmatpush1.msra.mxu0 0.0
  %181 = vmatprep.subr.mxu0 0.0
  %182 = vmatpush1.msra.mxu0 0.0
  %183 = vmatprep.subr.mxu0 0.0
  %184 = vmatpush1.msra.mxu0 0.0
  %185 = vmatprep.subr.mxu0 0.0
  %186 = vmatpush1.msra.mxu0 0.0
  %187 = vmatprep.subr.mxu0 0.0
  %188 = vmatpush1.msra.mxu0 0.0
  %189 = vmatprep.subr.mxu0 0.0
  %190 = vmatpush1.msra.mxu0 0.0
  %191 = vmatprep.subr.mxu0 0.0
  %192 = vmatpush1.msra.mxu0 0.0
  %193 = vmatprep.subr.mxu0 0.0
  %194 = vmatpush1.msra.mxu0 0.0
  %195 = vmatprep.mubr.f32.mxu0 0.0
  %196 = vmatmul.mubr.f32.gmra.mrb[0].mxu0 %v107
  %v197 = vpop.f32.mrb[0].mxu0
  %v198 = vadd.f32 %v129, %v197
  %v199 = vpop.f32.mrb[0].mxu0
  %200 = vdwg.mxu0
  %vm201 = vcmask 15360
  %202 = vst.msk [vmem:[%s5] sm:$0xff] %vm201, %v198
  // Predicated region
  $region22: #{dqn_forward.1} parent=0 // pred_check
    _
  $region23: #{dqn_forward.1} parent=0 // pred_check_branch
    %204 = sbr.rel (0) target = $region25
  $region24: #{dqn_forward.1} parent=0 // pred_region
    _
  $region25: #{dqn_forward.1} parent=0 // pred_fallthru
    _
  // Predicated region
  $region26: #{dqn_forward.1} parent=0 // pred_check
    _
  $region27: #{dqn_forward.1} parent=0 // pred_check_branch
    %206 = sbr.rel (0) target = $region29
  $region28: #{dqn_forward.1} parent=0 // pred_region
    _
  $region29: #{dqn_forward.1} parent=0 // pred_fallthru
    _

</llo_original>
